<compile_context>
chip_gen: v6e
topology: v6e:2x2x1
jax: 0.10.0
libtpu: 0.0.40
codegen_flags: <defaults>
</compile_context>

<pallas_src>
import functools

import jax
import jax.numpy as jnp
from jax import lax
from jax.experimental import pallas as pl
from jax.experimental.pallas import tpu as pltpu


def _cdiv(a, b):
    return -(-a // b)


def _vmem_capacity_bytes() -> int:
    try:
        info = pltpu.get_tpu_info()
        cap = getattr(info, "vmem_capacity_bytes", None)
        if cap:
            return int(cap)
    except Exception:
        pass
    return 64 * 1024 * 1024  # conservative default (v7x per-core VMEM)


@functools.lru_cache(maxsize=None)
def _roll_is_usable(hw: int, w: int, dtype_name: str) -> bool:
    """Feature-probe: does pltpu.roll lower for this lane width / dtype and
    match jnp.roll semantics?  One tiny pallas_call, cached per shape/dtype."""
    try:
        dtype = jnp.dtype(dtype_name)
        x = (jnp.arange(8 * hw, dtype=jnp.float32) % 251.0).astype(dtype).reshape(8, hw)

        def probe_kernel(x_ref, a_ref, b_ref):
            v = x_ref[...]
            a_ref[...] = pltpu.roll(v, shift=hw - 1, axis=1)
            b_ref[...] = pltpu.roll(v, shift=hw - w, axis=1)

        a, b = pl.pallas_call(
            probe_kernel,
            out_shape=(jax.ShapeDtypeStruct((8, hw), dtype),
                       jax.ShapeDtypeStruct((8, hw), dtype)),
        )(x)
        return bool(jnp.array_equal(a, jnp.roll(x, hw - 1, axis=1))
                    and jnp.array_equal(b, jnp.roll(x, hw - w, axis=1)))
    except Exception:
        return False


def _tv_kernel(x_ref, acc_ref, *, n_planes, tb, h, w, inv_ch, inv_cw,
               mask_tail, use_roll):
    """Accumulate sum(dh^2)/count_h + sum(dw^2)/count_w over one (tb, h*w)
    slab of flattened planes into the lane-dense (1, h*w) f32 accumulator,
    which is VMEM-resident across the whole grid (out index_map ignores j)."""
    hw = h * w
    j = pl.program_id(0)

    @pl.when(j == 0)
    def _init():
        acc_ref[...] = jnp.zeros_like(acc_ref)

    x = x_ref[...]
    if not jnp.issubdtype(x.dtype, jnp.floating):
        x = x.astype(jnp.float32)

    if mask_tail:
        # Last (partial) block: planes >= n_planes hold uninitialized VMEM.
        plane = j * tb + lax.broadcasted_iota(jnp.int32, (tb, 1), 0)
        x = jnp.where(plane < n_planes, x, jnp.zeros_like(x))

    col = lax.broadcasted_iota(jnp.int32, (1, hw), 1)
    # Static per-column scales: 1/count at valid diff positions, 0 at the wrap
    # column (w-term) / wrap rows (h-term).  Folding 1/count here keeps a single
    # accumulator and lane-dense stores.
    scale_w = jnp.where(col % w != w - 1, inv_cw, 0.0).astype(jnp.float32)
    scale_h = jnp.where(col < (h - 1) * w, inv_ch, 0.0).astype(jnp.float32)

    if use_roll:
        # Neighbour values via XLU rotations (no (8,128)-crossing slices):
        #   x_s1[i] == x[i+1 mod hw]      x_sw[i] == x[i+w mod hw]
        x_s1 = pltpu.roll(x, shift=hw - 1, axis=1)
        x_sw = pltpu.roll(x, shift=hw - w, axis=1)
        dw = (x_s1 - x).astype(jnp.float32)
        dh = (x_sw - x).astype(jnp.float32)
        contrib = dw * dw * scale_w + dh * dh * scale_h           # (tb, hw)
        acc_ref[...] += jnp.sum(contrib, axis=0, keepdims=True)   # (1, hw)
    else:
        # Fallback: slice-based diffs (always-lowerable formulation).
        dw = (x[:, 1:] - x[:, : hw - 1]).astype(jnp.float32)      # (tb, hw-1)
        dh = (x[:, w:] - x[:, : hw - w]).astype(jnp.float32)      # (tb, hw-w)
        acc_ref[:, : hw - 1] += jnp.sum(dw * dw * scale_w[:, : hw - 1],
                                        axis=0, keepdims=True)
        acc_ref[:, : hw - w] += inv_ch * jnp.sum(dh * dh, axis=0, keepdims=True)


def tv_loss(x, tv_loss_weight=1.0):
    """TVLoss forward pass.  x: (B, C, H, W).  Matches the PyTorch TVLoss module."""
    B, C, H, W = x.shape
    if H < 2 or W < 2:
        # Degenerate spatial dim: the reference computes 0/0 -> nan.
        return jnp.asarray(float("nan"), dtype=jnp.float32)

    N = B * C
    HW = H * W
    x2 = x.reshape(N, HW)  # pure reshape; planes stay contiguous in HBM

    count_h = C * (H - 1) * W
    count_w = C * H * (W - 1)
    inv_ch = 1.0 / count_h
    inv_cw = 1.0 / count_w

    # --- tiling: as many whole planes per grid step as the VMEM budget allows.
    vmem_cap = _vmem_capacity_bytes()
    big_vmem = vmem_cap >= 96 * 1024 * 1024                # v5e/v6e 128 MiB, v7x 64 MiB
    work_budget = (8 if big_vmem else 4) * 1024 * 1024     # per f32-sized tile
    vmem_limit = (64 if big_vmem else 40) * 1024 * 1024

    tb = max(1, min(N, work_budget // (HW * 4)))
    if tb < N:
        # keep the sublane (second-minor) block dim 8-aligned
        tb = max(8, (tb // 8) * 8) if tb >= 8 else min(N, 8)
    if HW * 4 * tb > work_budget:
        # whole planes are large; give the pipeline more headroom
        vmem_limit = min(int(vmem_cap * 0.9), max(vmem_limit, 10 * tb * HW * 4))
        # TODO(synk): tile along H with a 1-row halo for very large images so
        #             TB can stay >= 8 inside the byte budget.
    steps = int(_cdiv(N, tb))
    mask_tail = (N % tb) != 0

    roll_dtype = x.dtype if jnp.issubdtype(x.dtype, jnp.floating) else jnp.dtype(jnp.float32)
    use_roll = _roll_is_usable(HW, W, jnp.dtype(roll_dtype).name)

    kernel = functools.partial(
        _tv_kernel, n_planes=N, tb=tb, h=H, w=W,
        inv_ch=inv_ch, inv_cw=inv_cw, mask_tail=mask_tail, use_roll=use_roll)

    itemsize = jnp.dtype(x.dtype).itemsize
    cost = pl.CostEstimate(
        flops=8 * N * HW, transcendentals=0,
        bytes_accessed=N * HW * itemsize + HW * 4)

    # TODO(synk): on small-VMEM parts, sweep pipeline_mode=pl.Buffered(3) on the
    #             input spec once measured (expected win is a few percent).
    acc = pl.pallas_call(
        kernel,
        out_shape=jax.ShapeDtypeStruct((1, HW), jnp.float32),
        grid=(steps,),
        in_specs=[pl.BlockSpec((tb, HW), lambda j: (j, 0))],
        out_specs=pl.BlockSpec((1, HW), lambda j: (0, 0)),
        compiler_params=pltpu.CompilerParams(
            dimension_semantics=("arbitrary",),
            vmem_limit_bytes=int(vmem_limit),
        ),
        cost_estimate=cost,
    )(x2)

    # Single tiny cross-lane reduction outside the kernel.
    return (2.0 * tv_loss_weight / B) * jnp.sum(acc)


def _tv_loss_ref(x, tv_loss_weight=1.0):
    B, C, H, W = x.shape
    count_h = C * (H - 1) * W
    count_w = C * H * (W - 1)
    h_tv = jnp.sum((x[:, :, 1:, :] - x[:, :, :-1, :]) ** 2)
    w_tv = jnp.sum((x[:, :, :, 1:] - x[:, :, :, :-1]) ** 2)
    return tv_loss_weight * 2.0 * (h_tv / count_h + w_tv / count_w) / B


if __name__ == "__main__":
    key = jax.random.PRNGKey(0)
    x = jax.random.normal(key, (2, 4, 16, 16), dtype=jnp.float32)

    out = tv_loss(x, tv_loss_weight=1.0)
    out = jax.block_until_ready(out)

    ref = _tv_loss_ref(x, tv_loss_weight=1.0)
    assert jnp.allclose(out, ref, rtol=1e-5, atol=1e-5), (out, ref)
    print("KERNEL_OK")
</pallas_src>

<mosaic_0001>
module attributes {stable_mosaic.version = 11 : i64} {
  func.func @probe_kernel(%arg0: memref<8x256xf32, #tpu.memory_space<vmem>>, %arg1: memref<8x256xf32, #tpu.memory_space<vmem>>, %arg2: memref<8x256xf32, #tpu.memory_space<vmem>>) attributes {dimension_semantics = [], scalar_prefetch = 0 : i64, scratch_operands = 0 : i64, tpu.core_type = #tpu.core_type<tc>} {
    %c0 = arith.constant 0 : index
    %c0_0 = arith.constant 0 : index
    %0 = vector.load %arg0[%c0, %c0_0] : memref<8x256xf32, #tpu.memory_space<vmem>>, vector<8x256xf32>
    %c255_i32 = arith.constant 255 : i32
    %1 = tpu.dynamic_rotate %0 by %c255_i32 dim 1 : vector<8x256xf32>, i32 -> vector<8x256xf32>
    %c0_1 = arith.constant 0 : index
    %c0_2 = arith.constant 0 : index
    %2 = vector.load %arg1[%c0_1, %c0_2] : memref<8x256xf32, #tpu.memory_space<vmem>>, vector<8x256xf32>
    tpu.vector_store %arg1[%c0_1, %c0_2], %1 {strides = array<i32>} : memref<8x256xf32, #tpu.memory_space<vmem>>, vector<8x256xf32>,
    %c240_i32 = arith.constant 240 : i32
    %3 = tpu.dynamic_rotate %0 by %c240_i32 dim 1 : vector<8x256xf32>, i32 -> vector<8x256xf32>
    %c0_3 = arith.constant 0 : index
    %c0_4 = arith.constant 0 : index
    %4 = vector.load %arg2[%c0_3, %c0_4] : memref<8x256xf32, #tpu.memory_space<vmem>>, vector<8x256xf32>
    tpu.vector_store %arg2[%c0_3, %c0_4], %3 {strides = array<i32>} : memref<8x256xf32, #tpu.memory_space<vmem>>, vector<8x256xf32>,
    return
  }
}

module attributes {stable_mosaic.version = 11 : i64} {
  func.func @_tv_kernel(%arg0: i32, %arg1: memref<8x256xf32, #tpu.memory_space<vmem>>, %arg2: memref<1x256xf32, #tpu.memory_space<vmem>>) attributes {dimension_semantics = [#tpu.dimension_semantics<arbitrary>], iteration_bounds = array<i64: 1>, scalar_prefetch = 0 : i64, scratch_operands = 0 : i64, tpu.core_type = #tpu.core_type<tc>, window_params = [{transform_indices = @transform_0, window_bounds = array<i64: 8, 256>}, {pipeline_mode = #tpu.pipeline_mode<synchronous>, transform_indices = @transform_1, window_bounds = array<i64: 1, 256>}]} {
    %c0_i32 = arith.constant 0 : i32
    %0 = arith.cmpi eq, %arg0, %c0_i32 : i32
    %1 = arith.extui %0 : i1 to i32
    %c0_i32_0 = arith.constant 0 : i32
    %2 = arith.cmpi ne, %1, %c0_i32_0 : i32
    scf.if %2 {
      %cst_18 = arith.constant 0.000000e+00 : f32
      %49 = vector.broadcast %cst_18 : f32 to vector<1x256xf32>
      %c0_19 = arith.constant 0 : index
      %c0_20 = arith.constant 0 : index
      %50 = vector.load %arg2[%c0_19, %c0_20] : memref<1x256xf32, #tpu.memory_space<vmem>>, vector<1x256xf32>
      tpu.vector_store %arg2[%c0_19, %c0_20], %49 {strides = array<i32>} : memref<1x256xf32, #tpu.memory_space<vmem>>, vector<1x256xf32>,
    } else {
    }
    %c0 = arith.constant 0 : index
    %c0_1 = arith.constant 0 : index
    %3 = vector.load %arg1[%c0, %c0_1] : memref<8x256xf32, #tpu.memory_space<vmem>>, vector<8x256xf32>
    %4 = tpu.iota {dimensions = array<i32: 1>} : vector<1x256xi32>
    %c16_i32 = arith.constant 16 : i32
    %c0_i32_2 = arith.constant 0 : i32
    %5 = arith.cmpi eq, %c16_i32, %c0_i32_2 : i32
    %c1_i32 = arith.constant 1 : i32
    %6 = arith.select %5, %c1_i32, %c16_i32 : i32
    %7 = vector.broadcast %6 : i32 to vector<1x256xi32>
    %8 = arith.remsi %4, %7 : vector<1x256xi32>
    %c0_i32_3 = arith.constant 0 : i32
    %9 = vector.broadcast %c0_i32_3 : i32 to vector<1x256xi32>
    %10 = arith.cmpi ne, %8, %9 : vector<1x256xi32>
    %c0_i32_4 = arith.constant 0 : i32
    %11 = vector.broadcast %c0_i32_4 : i32 to vector<1x256xi32>
    %12 = arith.cmpi slt, %8, %11 : vector<1x256xi32>
    %c0_i32_5 = arith.constant 0 : i32
    %13 = arith.cmpi slt, %6, %c0_i32_5 : i32
    %14 = vector.broadcast %13 : i1 to vector<1x256xi1>
    %15 = vector.broadcast %14 : vector<1x256xi1> to vector<1x256xi1>
    %16 = arith.xori %12, %15 : vector<1x256xi1>
    %17 = arith.andi %16, %10 : vector<1x256xi1>
    %18 = vector.broadcast %6 : i32 to vector<1x256xi32>
    %19 = arith.addi %8, %18 : vector<1x256xi32>
    %20 = arith.select %17, %19, %8 : vector<1x256xi1>, vector<1x256xi32>
    %c15_i32 = arith.constant 15 : i32
    %21 = vector.broadcast %c15_i32 : i32 to vector<1x256xi32>
    %22 = arith.cmpi ne, %20, %21 : vector<1x256xi32>
    %cst = arith.constant 0.00104166672 : f32
    %cst_6 = arith.constant 0.000000e+00 : f32
    %23 = vector.broadcast %cst : f32 to vector<1x256xf32>
    %24 = vector.broadcast %cst_6 : f32 to vector<1x256xf32>
    %25 = arith.select %22, %23, %24 : vector<1x256xi1>, vector<1x256xf32>
    %26 = vector.extract_strided_slice %3 {offsets = [0, 1], sizes = [8, 255], strides = [1, 1]} : vector<8x256xf32> to vector<8x255xf32>
    %27 = vector.extract_strided_slice %3 {offsets = [0, 0], sizes = [8, 255], strides = [1, 1]} : vector<8x256xf32> to vector<8x255xf32>
    %28 = arith.subf %26, %27 : vector<8x255xf32>
    %29 = vector.extract_strided_slice %3 {offsets = [0, 16], sizes = [8, 240], strides = [1, 1]} : vector<8x256xf32> to vector<8x240xf32>
    %30 = vector.extract_strided_slice %3 {offsets = [0, 0], sizes = [8, 240], strides = [1, 1]} : vector<8x256xf32> to vector<8x240xf32>
    %31 = arith.subf %29, %30 : vector<8x240xf32>
    %c0_7 = arith.constant 0 : index
    %c0_8 = arith.constant 0 : index
    %32 = vector.load %arg2[%c0_7, %c0_8] : memref<1x256xf32, #tpu.memory_space<vmem>>, vector<1x255xf32>
    %33 = arith.mulf %28, %28 : vector<8x255xf32>
    %34 = vector.extract_strided_slice %25 {offsets = [0, 0], sizes = [1, 255], strides = [1, 1]} : vector<1x256xf32> to vector<1x255xf32>
    %35 = vector.broadcast %34 : vector<1x255xf32> to vector<8x255xf32>
    %36 = arith.mulf %33, %35 : vector<8x255xf32>
    %cst_9 = arith.constant dense<0.000000e+00> : vector<255xf32>
    %37 = vector.multi_reduction <add>, %36, %cst_9 [0] : vector<8x255xf32> to vector<255xf32>
    %38 = vector.shape_cast %37 : vector<255xf32> to vector<1x255xf32>
    %39 = arith.addf %32, %38 : vector<1x255xf32>
    %c0_10 = arith.constant 0 : index
    %c0_11 = arith.constant 0 : index
    %40 = vector.load %arg2[%c0_10, %c0_11] : memref<1x256xf32, #tpu.memory_space<vmem>>, vector<1x255xf32>
    tpu.vector_store %arg2[%c0_10, %c0_11], %39 {strides = array<i32>} : memref<1x256xf32, #tpu.memory_space<vmem>>, vector<1x255xf32>,
    %c0_12 = arith.constant 0 : index
    %c0_13 = arith.constant 0 : index
    %41 = vector.load %arg2[%c0_12, %c0_13] : memref<1x256xf32, #tpu.memory_space<vmem>>, vector<1x240xf32>
    %42 = arith.mulf %31, %31 : vector<8x240xf32>
    %cst_14 = arith.constant dense<0.000000e+00> : vector<240xf32>
    %43 = vector.multi_reduction <add>, %42, %cst_14 [0] : vector<8x240xf32> to vector<240xf32>
    %44 = vector.shape_cast %43 : vector<240xf32> to vector<1x240xf32>
    %cst_15 = arith.constant 0.00104166672 : f32
    %45 = vector.broadcast %cst_15 : f32 to vector<1x240xf32>
    %46 = arith.mulf %45, %44 : vector<1x240xf32>
    %47 = arith.addf %41, %46 : vector<1x240xf32>
    %c0_16 = arith.constant 0 : index
    %c0_17 = arith.constant 0 : index
    %48 = vector.load %arg2[%c0_16, %c0_17] : memref<1x256xf32, #tpu.memory_space<vmem>>, vector<1x240xf32>
    tpu.vector_store %arg2[%c0_16, %c0_17], %47 {strides = array<i32>} : memref<1x256xf32, #tpu.memory_space<vmem>>, vector<1x240xf32>,
    return
  }
  func.func @transform_0(%arg0: i32) -> (i32, i32) {
    %c0_i32 = arith.constant 0 : i32
    %c0_i32_0 = arith.constant 0 : i32
    return %arg0, %c0_i32 : i32, i32
  }
  func.func @transform_1(%arg0: i32) -> (i32, i32) {
    %c0_i32 = arith.constant 0 : i32
    %c0_i32_0 = arith.constant 0 : i32
    %c0_i32_1 = arith.constant 0 : i32
    return %c0_i32, %c0_i32_0 : i32, i32
  }
}

</mosaic_0001>

<llo_original>
// kernel: tpu_custom_call.1
$region0: #{tpu_custom_call.1}
  #allocation0 [shape = 'u32[]', space=smem, size = 0x4, offset = 0x4, fixed_abs, tag = 'smem constant byte address 0x4 - core index']
  #allocation1 [shape = 'u32[144,128]{1,0:T(1,128)}', space=vmem, size = 0x12000, scoped, tag = 'internal scratch']
  %s0 = inlined_call_operand.hbm [shape: f32[8,256], index: 0, kind: input, shape index: {}]
  %s1 = inlined_call_operand.hbm [shape: f32[8,256], index: 1, kind: output, shape index: {0}]
  %s2 = inlined_call_operand.hbm [shape: f32[8,256], index: 2, kind: output, shape index: {1}]
  %3 = xla_tuple %s1, %s2
  %s4 = sld [smem:[#allocation0]]
  $region26: #{tpu_custom_call.1} parent=0
    _
  %s6 = ssub.s32 1, %s4
  %s7 = scalar_select 0, %s6, %s4
  $region1: #{tpu_custom_call.1} parent=0
    #allocation2 [shape = 'u8[8192]{0}', space=vmem, size = 0x2000, scoped, tag = 'input window, operand 0, single buffered']
    #allocation3 [shape = 's32[1]{0}', space=sflag, size = 0x4, scoped, tag = 'scoped memory for tpu_custom_call.1']
    #allocation4 [shape = 's32[1]{0}', space=sflag, size = 0x4, scoped, tag = 'scoped memory for tpu_custom_call.1']
    #allocation5 [shape = 'u8[8192]{0}', space=vmem, size = 0x2000, scoped, tag = 'output window, operand 0, single buffered']
    #allocation6 [shape = 'u8[8192]{0}', space=vmem, size = 0x2000, scoped, tag = 'output window, operand 1, single buffered']
    #allocation7 [shape = 's32[1]{0}', space=sflag, size = 0x4, scoped, tag = 'scoped memory for tpu_custom_call.1']
    %8 = vsyncpa [#allocation3], 0
    %9 = vsyncpa [#allocation4], 0
    %10 = vsyncpa [#allocation7], 0
    // Predicated region
    $region2: #{tpu_custom_call.1} parent=1 // pred_check
      _
    $region3: #{tpu_custom_call.1} parent=1 // pred_check_branch
      %12 = sbr.rel (0) target = $region5
    $region4: #{tpu_custom_call.1} parent=1 // pred_region
      %s14 = ssub.s32 256, 256
      %15 = vsyncadd [#allocation3], %s14
      %s17 = sshll.u32 [#allocation2], 4
      %s18 = int_to_ptr.vmem [resolvable:$true] %s17
      %20 = dma.hbm_to_vmem [thread:$0]  %s0, 256, %s18, [#allocation3]
    $region5: #{tpu_custom_call.1} parent=1 // pred_fallthru
      _
    // Predicated region
    $region6: #{tpu_custom_call.1} parent=1 // pred_check
      _
    $region7: #{tpu_custom_call.1} parent=1 // pred_check_branch
      %22 = sbr.rel (0) target = $region9
    $region8: #{tpu_custom_call.1} parent=1 // pred_region
      %23 = dma.done [#allocation3], 256
    $region9: #{tpu_custom_call.1} parent=1 // pred_fallthru
      _
    %v24 = vld [vmem:[#allocation2] sm:$0xff]
    %v25 = vld [vmem:[#allocation2 + $0x8] sm:$0xff]
    %26 = vrot.lane.b32.xlu0 %v24, 127
    %v27 = vpop.permute.xlu0 %26
    %28 = vrot.lane.b32.xlu0 %v25, 127
    %v29 = vpop.permute.xlu0 %28
    %v30 = vlaneseq
    %v31 = vand.u32 %v30, 127
    %vm32 = vcmp.lt.s32.totalorder %v31, 127
    %v33 = vsel %vm32, %v27, %v29
    %v34 = vsel %vm32, %v29, %v27
    %35 = vst [vmem:[#allocation5] sm:$0xff] %v33
    %36 = vst [vmem:[#allocation5 + $0x8] sm:$0xff] %v34
    %37 = vrot.lane.b32.xlu0 %v24, 112
    %v38 = vpop.permute.xlu0 %37
    %39 = vrot.lane.b32.xlu0 %v25, 112
    %v40 = vpop.permute.xlu0 %39
    %vm41 = vcmp.lt.s32.totalorder %v31, 112
    %v42 = vsel %vm41, %v38, %v40
    %v43 = vsel %vm41, %v40, %v38
    %44 = vst [vmem:[#allocation6] sm:$0xff] %v42
    %45 = vst [vmem:[#allocation6 + $0x8] sm:$0xff] %v43
    // Predicated region
    $region10: #{tpu_custom_call.1} parent=1 // pred_check
      _
    $region11: #{tpu_custom_call.1} parent=1 // pred_check_branch
      %47 = sbr.rel (0) target = $region13
    $region12: #{tpu_custom_call.1} parent=1 // pred_region
      %s49 = ssub.s32 256, 256
      %50 = vsyncadd [#allocation4], %s49
      %s52 = sshll.u32 [#allocation5], 4
      %s53 = int_to_ptr.vmem [resolvable:$true] %s52
      %55 = dma.vmem_to_hbm [thread:$0]  %s53, 256, %s1, [#allocation4]
    $region13: #{tpu_custom_call.1} parent=1 // pred_fallthru
      _
    // Predicated region
    $region14: #{tpu_custom_call.1} parent=1 // pred_check
      _
    $region15: #{tpu_custom_call.1} parent=1 // pred_check_branch
      %57 = sbr.rel (0) target = $region17
    $region16: #{tpu_custom_call.1} parent=1 // pred_region
      %s59 = ssub.s32 256, 256
      %60 = vsyncadd [#allocation7], %s59
      %s62 = sshll.u32 [#allocation6], 4
      %s63 = int_to_ptr.vmem [resolvable:$true] %s62
      %65 = dma.vmem_to_hbm [thread:$0]  %s63, 256, %s2, [#allocation7]
    $region17: #{tpu_custom_call.1} parent=1 // pred_fallthru
      _
    // Predicated region
    $region18: #{tpu_custom_call.1} parent=1 // pred_check
      _
    $region19: #{tpu_custom_call.1} parent=1 // pred_check_branch
      %67 = sbr.rel (0) target = $region21
    $region20: #{tpu_custom_call.1} parent=1 // pred_region
      %68 = dma.done [#allocation4], 256
    $region21: #{tpu_custom_call.1} parent=1 // pred_fallthru
      _
    // Predicated region
    $region22: #{tpu_custom_call.1} parent=1 // pred_check
      _
    $region23: #{tpu_custom_call.1} parent=1 // pred_check_branch
      %70 = sbr.rel (0) target = $region25
    $region24: #{tpu_custom_call.1} parent=1 // pred_region
      %71 = dma.done [#allocation7], 256
    $region25: #{tpu_custom_call.1} parent=1 // pred_fallthru
      _
    %72 = vsyncpa [#allocation3], 1
    %73 = vsyncpa [#allocation4], 1
    %74 = vsyncpa [#allocation7], 1

// kernel: tpu_custom_call.1
$region0: #{tpu_custom_call.1}
  #allocation0 [shape = 'u32[]', space=smem, size = 0x4, offset = 0x4, fixed_abs, tag = 'smem constant byte address 0x4 - core index']
  #allocation1 [shape = 'u32[144,128]{1,0:T(1,128)}', space=vmem, size = 0x12000, scoped, tag = 'internal scratch']
  %s0 = inlined_call_operand.hbm [shape: f32[8,256], index: 0, kind: input, shape index: {}]
  %s1 = inlined_call_operand.hbm [shape: f32[1,256], index: 1, kind: output, shape index: {}]
  %s2 = sld [smem:[#allocation0]]
  $region22: #{tpu_custom_call.1} parent=0
    _
  %s4 = ssub.s32 1, %s2
  %s5 = scalar_select 0, %s4, %s2
  $region1: #{tpu_custom_call.1} parent=0
    #allocation2 [shape = 'u8[8192]{0}', space=vmem, size = 0x2000, scoped, tag = 'input window, operand 0, single buffered']
    #allocation3 [shape = 's32[1]{0}', space=sflag, size = 0x4, scoped, tag = 'scoped memory for tpu_custom_call.1']
    #allocation4 [shape = 's32[1]{0}', space=sflag, size = 0x4, scoped, tag = 'scoped memory for tpu_custom_call.1']
    #allocation5 [shape = 'u8[1024]{0}', space=vmem, size = 0x400, scoped, tag = 'output window, operand 0, single buffered']
    %6 = vsyncpa [#allocation3], 0
    %7 = vsyncpa [#allocation4], 0
    // Predicated region
    $region2: #{tpu_custom_call.1} parent=1 // pred_check
      _
    $region3: #{tpu_custom_call.1} parent=1 // pred_check_branch
      %9 = sbr.rel (0) target = $region5
    $region4: #{tpu_custom_call.1} parent=1 // pred_region
      %s11 = ssub.s32 256, 256
      %12 = vsyncadd [#allocation3], %s11
      %s14 = sshll.u32 [#allocation2], 4
      %s15 = int_to_ptr.vmem [resolvable:$true] %s14
      %17 = dma.hbm_to_vmem [thread:$0]  %s0, 256, %s15, [#allocation3]
    $region5: #{tpu_custom_call.1} parent=1 // pred_fallthru
      _
    // Predicated region
    $region6: #{tpu_custom_call.1} parent=1 // pred_check
      _
    $region7: #{tpu_custom_call.1} parent=1 // pred_check_branch
      %19 = sbr.rel (0) target = $region9
    $region8: #{tpu_custom_call.1} parent=1 // pred_region
      %20 = dma.done [#allocation3], 256
    $region9: #{tpu_custom_call.1} parent=1 // pred_fallthru
      _
    %p21 = scmp.eq.s32.totalorder 0, 0
    // Predicated region
    $region10: #{tpu_custom_call.1} parent=1 // pred_check
      %p22 = pneg %p21
    $region11: #{tpu_custom_call.1} parent=1 // pred_check_branch
      %24 = sbr.rel (%p22) target = $region13
    $region12: #{tpu_custom_call.1} parent=1 // pred_region
      %v25 = vlaneseq
      %vm26 = vcmp.ge.s32.totalorder %v25, 0
      %vm27 = vcmp.lt.s32.totalorder %v25, 256
      %vm28 = vmand %vm26, %vm27
      %29 = vst.msk [vmem:[#allocation5] sm:$0x3] %vm28, 0.0
    $region13: #{tpu_custom_call.1} parent=1 // pred_fallthru
      _
    %v30 = vld [vmem:[#allocation2] sm:$0xff]
    %v31 = vld [vmem:[#allocation2 + $0x8] sm:$0xff]
    %v32 = vlaneseq
    %v33 = vand.u32 %v32, 127
    %v34 = vadd.s32 %v33, 128
    %vm35 = vcmp.lt.s32.totalorder %v33, 0
    %v36 = vsub.s32 0, %v33
    %v37 = vsel %vm35, %v36, %v33
    %v38 = vshrl.u32 %v37, 4
    %v39 = vand.u32 %v37, 15
    %v40 = vsub.s32 0, %v39
    %v41 = vsel %vm35, %v40, %v39
    %vm42 = vcmp.lt.s32.totalorder %v34, 0
    %v43 = vsub.s32 0, %v34
    %v44 = vsel %vm42, %v43, %v34
    %v45 = vshrl.u32 %v44, 4
    %v46 = vand.u32 %v44, 15
    %v47 = vsub.s32 0, %v46
    %v48 = vsel %vm42, %v47, %v46
    %vm49 = vcmp.ne.s32.totalorder %v41, 0
    %vm50 = vcmp.ne.s32.totalorder %v48, 0
    %vm51 = vcmp.lt.s32.totalorder %v41, 0
    %vm52 = vcmp.lt.s32.totalorder %v48, 0
    %vm53 = vmand %vm51, %vm49
    %vm54 = vmand %vm52, %vm50
    %v55 = vadd.s32 %v41, 16
    %v56 = vadd.s32 %v48, 16
    %v57 = vsel %vm53, %v55, %v41
    %v58 = vsel %vm54, %v56, %v48
    %vm59 = vcmp.ne.s32.totalorder %v57, 15
    %vm60 = vcmp.ne.s32.totalorder %v58, 15
    %v61 = vsel %vm59, 0.0010416667, 0.0
    %v62 = vsel %vm60, 0.0010416667, 0.0
    %65 = vrot.lane.b32.xlu0 %v30, 1
    %v66 = vpop.permute.xlu0 %65
    %67 = vrot.lane.b32.xlu0 %v31, 1
    %v68 = vpop.permute.xlu0 %67
    %vm69 = vcmask 7168
    %v70 = vsel %vm69, %v66, %v68
    %v73 = vsub.f32 %v30, %v66
    %v74 = vsub.f32 %v31, %v70
    %75 = vrot.lane.b32.xlu0 %v30, 16
    %v76 = vpop.permute.xlu0 %75
    %77 = vrot.lane.b32.xlu0 %v31, 16
    %v78 = vpop.permute.xlu0 %77
    %vm79 = vcmask 130048
    %v80 = vsel %vm79, %v76, %v78
    %v83 = vsub.f32 %v30, %v76
    %v84 = vsub.f32 %v31, %v80
    %v85 = vld [vmem:[#allocation5] sm:$0x3]
    %v86 = vmul.f32 %v73, %v73
    %v87 = vmul.f32 %v74, %v74
    %90 = vrot.lane.b32.xlu0 %v61, 1
    %v91 = vpop.permute.xlu0 %90
    %92 = vrot.lane.b32.xlu0 %v62, 1
    %v93 = vpop.permute.xlu0 %92
    %v94 = vsel %vm69, %v91, %v93
    %v97 = vmul.f32 %v86, %v91
    %v98 = vmul.f32 %v87, %v94
    %vm99 = vcmask 1047560
    %v100 = vsel %vm99, %v97, 0.0
    %v101 = vrot.slane %v100, 4
    %v102 = vadd.f32 %v100, %v101
    %v103 = vrot.slane %v102, 2
    %v104 = vadd.f32 %v102, %v103
    %v105 = vrot.slane %v104, 1
    %v106 = vadd.f32 %v104, %v105
    %v107 = vrot.slane %v98, 4
    %v108 = vadd.f32 %v98, %v107
    %v109 = vrot.slane %v108, 2
    %v110 = vadd.f32 %v108, %v109
    %v111 = vrot.slane %v110, 1
    %v112 = vadd.f32 %v110, %v111
    %v115 = vcombine.low %v106, %v112
    %v117 = vunpack.c.l.s4 1966171168
    %v118 = vunpack.c.0.s8 %v117
    %v119 = vlaneseq
    %v120 = vshrl.u32 %v119, 7
    %v121 = vsub.s32 %v118, %v120
    %v122 = vrot.slane %v115, %v121
    %v124 = vunpack.c.l.s4 1966171168
    %v125 = vunpack.c.0.s8 %v124
    %v126 = vlaneseq
    %v127 = vshrl.u32 %v126, 7
    %v128 = vsub.s32 %v125, %v127
    %v129 = vrot.slane %v122, %v128
    %130 = vrot.lane.b32.xlu0 %v129, 127
    %v131 = vpop.permute.xlu0 %130
    %v132 = vrot.slane %v131, 1
    %vm133 = vcmask 1039360
    %v134 = vsel %vm133, %v131, %v132
    %v136 = vadd.f32 %v85, %v134
    %v137 = vlaneseq
    %vm138 = vcmp.ge.s32.totalorder %v137, 0
    %vm139 = vcmp.lt.s32.totalorder %v137, 255
    %vm140 = vmand %vm138, %vm139
    %141 = vst.msk [vmem:[#allocation5] sm:$0x3] %vm140, %v136
    %v142 = vld [vmem:[#allocation5] sm:$0x3]
    %v143 = vmul.f32 %v83, %v83
    %v144 = vmul.f32 %v84, %v84
    %vm145 = vcmask 1047680
    %v146 = vsel %vm145, %v143, 0.0
    %v147 = vrot.slane %v146, 4
    %v148 = vadd.f32 %v146, %v147
    %v149 = vrot.slane %v148, 2
    %v150 = vadd.f32 %v148, %v149
    %v151 = vrot.slane %v150, 1
    %v152 = vadd.f32 %v150, %v151
    %v153 = vrot.slane %v144, 4
    %v154 = vadd.f32 %v144, %v153
    %v155 = vrot.slane %v154, 2
    %v156 = vadd.f32 %v154, %v155
    %v157 = vrot.slane %v156, 1
    %v158 = vadd.f32 %v156, %v157
    %v159 = vmul.f32 %v152, 0.0010416667
    %v160 = vmul.f32 %v158, 0.0010416667
    %v163 = vcombine.low %v159, %v160
    %v165 = vunpack.c.l.s4 1966171168
    %v166 = vunpack.c.0.s8 %v165
    %v167 = vlaneseq
    %v168 = vshrl.u32 %v167, 7
    %v169 = vsub.s32 %v166, %v168
    %v170 = vrot.slane %v163, %v169
    %v172 = vunpack.c.l.s4 1966171168
    %v173 = vunpack.c.0.s8 %v172
    %v174 = vlaneseq
    %v175 = vshrl.u32 %v174, 7
    %v176 = vsub.s32 %v173, %v175
    %v177 = vrot.slane %v170, %v176
    %178 = vrot.lane.b32.xlu0 %v177, 112
    %v179 = vpop.permute.xlu0 %178
    %v180 = vrot.slane %v179, 1
    %vm181 = vcmask 916480
    %v182 = vsel %vm181, %v179, %v180
    %v184 = vadd.f32 %v142, %v182
    %vm185 = vcmp.lt.s32.totalorder %v137, 240
    %vm186 = vmand %vm138, %vm185
    %187 = vst.msk [vmem:[#allocation5] sm:$0x3] %vm186, %v184
    // Predicated region
    $region14: #{tpu_custom_call.1} parent=1 // pred_check
      _
    $region15: #{tpu_custom_call.1} parent=1 // pred_check_branch
      %189 = sbr.rel (0) target = $region17
    $region16: #{tpu_custom_call.1} parent=1 // pred_region
      %s191 = ssub.s32 32, 32
      %192 = vsyncadd [#allocation4], %s191
      %s194 = sshll.u32 [#allocation5], 4
      %s195 = int_to_ptr.vmem [resolvable:$true] %s194
      %197 = dma.vmem_to_hbm [thread:$0]  %s195, 32, %s1, [#allocation4]
    $region17: #{tpu_custom_call.1} parent=1 // pred_fallthru
      _
    // Predicated region
    $region18: #{tpu_custom_call.1} parent=1 // pred_check
      _
    $region19: #{tpu_custom_call.1} parent=1 // pred_check_branch
      %199 = sbr.rel (0) target = $region21
    $region20: #{tpu_custom_call.1} parent=1 // pred_region
      %200 = dma.done [#allocation4], 32
    $region21: #{tpu_custom_call.1} parent=1 // pred_fallthru
      _
    %201 = vsyncpa [#allocation3], 1
    %202 = vsyncpa [#allocation4], 1

</llo_original>
